<compile_context>
chip_gen: v7x
topology: tpu7x:2x2x1
jax: 0.10.0
libtpu: 0.0.40
codegen_flags: <defaults>
</compile_context>

<pallas_src>
import functools

import jax
import jax.numpy as jnp
from jax.experimental import pallas as pl
from jax.experimental.pallas import tpu as pltpu


def _round_up(x, m):
    return ((x + m - 1) // m) * m


def focal_loss_kernel(predict_ref, label_ref, alphag_ref, out_ref, *,
                      gamma, n_valid, tile_n, tiles_per_split, need_mask):
    o = pl.program_id(0)   # megacore split (parallel)
    i = pl.program_id(1)   # row-tile within split (reduction / arbitrary)

    @pl.when(i == 0)
    def _init():
        out_ref[0, 0] = jnp.float32(0.0)

    logits = predict_ref[...].astype(jnp.float32)             # (tile_n, C) f32 (in-kernel upcast)
    # Lane-dense (1, 1, tile_n) rows -> (tile_n, 1) columns (small 32-bit relayout).
    labels = label_ref[...].reshape(tile_n, 1)                 # (tile_n, 1) i32
    alpha = alphag_ref[...].reshape(tile_n, 1)                 # (tile_n, 1) f32

    tn, c = logits.shape
    class_ids = jax.lax.broadcasted_iota(jnp.int32, (tn, c), 1)

    # cross_entropy(predict, label, reduction='none'):
    #   ce_i = logsumexp(logits_i) - logits_i[label_i]
    m = jnp.max(logits, axis=-1, keepdims=True)                # (tile_n, 1)
    # TODO(synk): on v7x only, if a bundle dump shows the 1-wide EUP binding before
    # HBM, evaluate this exp in bf16 with an f32 lane-sum (gate on the 1e-4 tol).
    sum_exp = jnp.sum(jnp.exp(logits - m), axis=-1, keepdims=True)
    lse = jnp.log(sum_exp) + m
    # True-class logit via select + lane reduction (no materialized f32 one-hot,
    # no MXU matmul competing for the vector-extended slots).
    logit_true = jnp.sum(jnp.where(class_ids == labels, logits, 0.0),
                         axis=-1, keepdims=True)
    ce = lse - logit_true                                      # (tile_n, 1), >= 0

    pt = jnp.exp(-ce)
    one_minus_pt = jnp.maximum(1.0 - pt, 0.0)
    focal = one_minus_pt * one_minus_pt if gamma == 2.0 else one_minus_pt ** gamma
    loss = alpha * focal * ce                                  # (tile_n, 1)

    if need_mask:
        # Zero rows past the true batch size: covers the garbage tail of the
        # partial final block AND whole duplicate tiles created by clamping the
        # logits index_map for padded grid steps (unclamped index used here).
        row_ids = jax.lax.broadcasted_iota(jnp.int32, (tn, 1), 0)
        global_row = (o * tiles_per_split + i) * tile_n + row_ids
        loss = jnp.where(global_row < n_valid, loss, 0.0)

    out_ref[0, 0] += jnp.sum(loss)


def focal_loss(predict, label, alpha=None, gamma=2.0, tile_n=None, num_splits=None):
    """predict: (N, C) float logits (any float dtype, upcast in-kernel);
    label: (N,) int class indices; alpha: per-class weights (C,), scalar, or None."""
    n, c = predict.shape
    if not jnp.issubdtype(predict.dtype, jnp.floating):
        predict = predict.astype(jnp.float32)
    itemsize = predict.dtype.itemsize

    # Per-class alpha (module default alpha=[1.0] -> weight 1 for every class).
    if alpha is None:
        alpha_vec = jnp.ones((c,), jnp.float32)
    else:
        alpha_vec = jnp.asarray(alpha, jnp.float32).reshape(-1)
        if alpha_vec.shape[0] == 1:
            alpha_vec = jnp.broadcast_to(alpha_vec, (c,))

    label = label.astype(jnp.int32)
    # Per-sample alpha gathered ONCE in the wrapper (N-element XLA gather);
    # in-kernel it is a single (tile_n, 1) multiply.
    alpha_g = alpha_vec[label]                                  # (N,) f32

    # Generation-aware knobs.
    kind = ""
    try:
        kind = jax.devices()[0].device_kind.lower()
    except Exception:
        pass
    is_v7 = "v7" in kind
    if num_splits is None:
        num_splits = 2 if is_v7 else 1        # 2 TCs only on v7x
    target_bytes = (2 << 20) if is_v7 else (4 << 20)   # f32 working-set per block
    vmem_limit = (32 << 20) if is_v7 else (64 << 20)

    # Tile sizing: size by the f32 lane-padded VMEM footprint; temporaries
    # (upcast logits, exp stream, select) are ~4-6x the block, which fits the
    # vmem limits chosen above on every generation.
    c_pad = _round_up(c, 128)
    if tile_n is None:
        tile_n = max(8, (target_bytes // (c_pad * 4)) // 8 * 8)
        tile_n = min(tile_n, 4096 if is_v7 else 8192)
    tile_n = max(8, _round_up(int(tile_n), 8))
    tile_n = min(tile_n, _round_up(n, 8))

    num_tiles_real = -(-n // tile_n)
    splits = num_splits if (num_splits > 1 and num_tiles_real >= num_splits) else 1
    tiles_per_split = -(-num_tiles_real // splits)
    num_tiles_total = splits * tiles_per_split
    n_virtual = num_tiles_total * tile_n
    need_mask = (n_virtual != n)

    # Only the small per-sample vectors are padded (cheap); the big logits are
    # consumed in place via partial blocks + the clamped index_map below.
    if n_virtual != n:
        pad = n_virtual - n
        label = jnp.pad(label, (0, pad))
        alpha_g = jnp.pad(alpha_g, (0, pad))
    label_t = label.reshape(num_tiles_total, 1, tile_n)
    alpha_t = alpha_g.reshape(num_tiles_total, 1, tile_n)

    kernel = functools.partial(
        focal_loss_kernel, gamma=float(gamma), n_valid=n, tile_n=tile_n,
        tiles_per_split=tiles_per_split, need_mask=need_mask)

    last_tile = num_tiles_real - 1

    def logits_map(o, i):
        # Clamp so fully-padded duplicate grid steps re-read the last real block;
        # their rows are zeroed by the in-kernel mask (unclamped index).
        return (jnp.minimum(o * tiles_per_split + i, last_tile), 0)

    def small_map(o, i):
        return (o * tiles_per_split + i, 0, 0)

    cost = pl.CostEstimate(
        flops=10 * n * c,
        transcendentals=n * c + 2 * n,
        bytes_accessed=n * c * itemsize + n * 8 + splits * 4)

    # TODO(synk): if a trace shows exposed DMA for very small C, add
    # pipeline_mode=pl.Buffered(3) on the logits BlockSpec.
    partials = pl.pallas_call(
        kernel,
        out_shape=jax.ShapeDtypeStruct((splits, 1), jnp.float32),
        grid=(splits, tiles_per_split),
        in_specs=[
            pl.BlockSpec((tile_n, c), logits_map),
            pl.BlockSpec((1, 1, tile_n), small_map),
            pl.BlockSpec((1, 1, tile_n), small_map),
        ],
        out_specs=pl.BlockSpec((1, 1), lambda o, i: (o, 0),
                               memory_space=pltpu.MemorySpace.SMEM),
        compiler_params=pltpu.CompilerParams(
            dimension_semantics=("parallel", "arbitrary"),
            vmem_limit_bytes=vmem_limit),
        cost_estimate=cost,
    )(predict, label_t, alpha_t)

    # reduction='mean' over the true (unpadded) batch size.
    return jnp.sum(partials) / jnp.float32(n)


def focal_loss_ref(predict, label, alpha=None, gamma=2.0):
    """Pure-JAX reference mirroring the PyTorch forward."""
    predict = predict.astype(jnp.float32)
    n, c = predict.shape
    if alpha is None:
        alpha = jnp.ones((c,), jnp.float32)
    alpha = jnp.asarray(alpha, jnp.float32).reshape(-1)
    if alpha.shape[0] == 1:
        alpha = jnp.broadcast_to(alpha, (c,))
    logp = jax.nn.log_softmax(predict, axis=-1)
    ce = -jnp.take_along_axis(logp, label[:, None].astype(jnp.int32), axis=-1)[:, 0]
    pt = jnp.exp(-ce)
    a = alpha[label]
    return jnp.mean(a * (1.0 - pt) ** gamma * ce)


if __name__ == "__main__":
    key = jax.random.PRNGKey(0)
    k1, k2, k3, k4 = jax.random.split(key, 4)

    # Test 1: single tile, f32, lane-dense class dim, per-class alpha.
    N1, C1 = 8, 128
    predict1 = jax.random.normal(k1, (N1, C1), dtype=jnp.float32)
    label1 = jax.random.randint(k2, (N1,), 0, C1, dtype=jnp.int32)
    alpha1 = jnp.linspace(0.5, 1.5, C1, dtype=jnp.float32)
    out1 = jax.block_until_ready(focal_loss(predict1, label1, alpha1, gamma=2.0))
    ref1 = focal_loss_ref(predict1, label1, alpha1, gamma=2.0)
    assert jnp.allclose(out1, ref1, rtol=1e-4, atol=1e-5), (out1, ref1)

    # Test 2: bf16 logits (in-kernel upcast), ragged N (partial final block +
    # masking), forced 2-way split (duplicate clamped tile path / megacore on v7x).
    N2, C2 = 300, 96
    predict2 = jax.random.normal(k3, (N2, C2), dtype=jnp.float32).astype(jnp.bfloat16)
    label2 = jax.random.randint(k4, (N2,), 0, C2, dtype=jnp.int32)
    alpha2 = jnp.linspace(0.25, 2.0, C2, dtype=jnp.float32)
    out2 = jax.block_until_ready(
        focal_loss(predict2, label2, alpha2, gamma=2.0, tile_n=64, num_splits=2))
    ref2 = focal_loss_ref(predict2, label2, alpha2, gamma=2.0)
    assert jnp.allclose(out2, ref2, rtol=1e-4, atol=1e-5), (out2, ref2)

    # Test 3: default alpha (module default -> weight 1.0 per class).
    out3 = jax.block_until_ready(focal_loss(predict1, label1, None, gamma=2.0))
    ref3 = focal_loss_ref(predict1, label1, None, gamma=2.0)
    assert jnp.allclose(out3, ref3, rtol=1e-4, atol=1e-5), (out3, ref3)

    print("KERNEL_OK")
</pallas_src>

<mosaic_0001>
module attributes {stable_mosaic.version = 11 : i64} {
  func.func @focal_loss_kernel(%arg0: i32, %arg1: i32, %arg2: memref<8x128xf32, #tpu.memory_space<vmem>>, %arg3: memref<1x1x8xi32, #tpu.memory_space<vmem>>, %arg4: memref<1x1x8xf32, #tpu.memory_space<vmem>>, %arg5: memref<1x1xf32, #tpu.memory_space<smem>>) attributes {dimension_semantics = [#tpu.dimension_semantics<parallel>, #tpu.dimension_semantics<arbitrary>], iteration_bounds = array<i64: 1, 1>, scalar_prefetch = 0 : i64, scratch_operands = 0 : i64, tpu.core_type = #tpu.core_type<tc>, window_params = [{transform_indices = @transform_0, window_bounds = array<i64: 8, 128>}, {transform_indices = @transform_1, window_bounds = array<i64: 1, 1, 8>}, {transform_indices = @transform_2, window_bounds = array<i64: 1, 1, 8>}, {transform_indices = @transform_3, window_bounds = array<i64: 1, 1>}]} {
    %c0_i32 = arith.constant 0 : i32
    %0 = arith.cmpi eq, %arg1, %c0_i32 : i32
    %1 = arith.extui %0 : i1 to i32
    %c0_i32_0 = arith.constant 0 : i32
    %2 = arith.cmpi ne, %1, %c0_i32_0 : i32
    scf.if %2 {
      %cst_19 = arith.constant 0.000000e+00 : f32
      %c0_20 = arith.constant 0 : index
      %c0_21 = arith.constant 0 : index
      %42 = memref.load %arg5[%c0_20, %c0_21] : memref<1x1xf32, #tpu.memory_space<smem>>
      memref.store %cst_19, %arg5[%c0_20, %c0_21] : memref<1x1xf32, #tpu.memory_space<smem>>
    } else {
    }
    %c0 = arith.constant 0 : index
    %c0_1 = arith.constant 0 : index
    %3 = vector.load %arg2[%c0, %c0_1] : memref<8x128xf32, #tpu.memory_space<vmem>>, vector<8x128xf32>
    %c0_2 = arith.constant 0 : index
    %c0_3 = arith.constant 0 : index
    %c0_4 = arith.constant 0 : index
    %4 = vector.load %arg3[%c0_2, %c0_3, %c0_4] : memref<1x1x8xi32, #tpu.memory_space<vmem>>, vector<1x1x8xi32>
    %5 = vector.shape_cast %4 : vector<1x1x8xi32> to vector<8x1xi32>
    %c0_5 = arith.constant 0 : index
    %c0_6 = arith.constant 0 : index
    %c0_7 = arith.constant 0 : index
    %6 = vector.load %arg4[%c0_5, %c0_6, %c0_7] : memref<1x1x8xf32, #tpu.memory_space<vmem>>, vector<1x1x8xf32>
    %7 = vector.shape_cast %6 : vector<1x1x8xf32> to vector<8x1xf32>
    %8 = tpu.iota {dimensions = array<i32: 1>} : vector<8x128xi32>
    %cst = arith.constant dense<0xFF800000> : vector<8xf32>
    %9 = vector.multi_reduction <maximumf>, %3, %cst [1] : vector<8x128xf32> to vector<8xf32>
    %10 = vector.shape_cast %9 : vector<8xf32> to vector<8x1xf32>
    %11 = vector.broadcast %10 : vector<8x1xf32> to vector<8x128xf32>
    %12 = arith.subf %3, %11 : vector<8x128xf32>
    %13 = math.exp %12 : vector<8x128xf32>
    %cst_8 = arith.constant dense<0.000000e+00> : vector<8xf32>
    %14 = vector.multi_reduction <add>, %13, %cst_8 [1] : vector<8x128xf32> to vector<8xf32>
    %15 = vector.shape_cast %14 : vector<8xf32> to vector<8x1xf32>
    %16 = math.log %15 : vector<8x1xf32>
    %17 = arith.addf %16, %10 : vector<8x1xf32>
    %18 = vector.broadcast %5 : vector<8x1xi32> to vector<8x128xi32>
    %19 = arith.cmpi eq, %8, %18 : vector<8x128xi32>
    %cst_9 = arith.constant 0.000000e+00 : f32
    %20 = vector.broadcast %cst_9 : f32 to vector<8x128xf32>
    %21 = arith.select %19, %3, %20 : vector<8x128xi1>, vector<8x128xf32>
    %cst_10 = arith.constant dense<0.000000e+00> : vector<8xf32>
    %22 = vector.multi_reduction <add>, %21, %cst_10 [1] : vector<8x128xf32> to vector<8xf32>
    %23 = vector.shape_cast %22 : vector<8xf32> to vector<8x1xf32>
    %24 = arith.subf %17, %23 : vector<8x1xf32>
    %cst_11 = arith.constant 0.000000e+00 : f32
    %25 = vector.broadcast %cst_11 : f32 to vector<8x1xf32>
    %26 = arith.subf %25, %24 : vector<8x1xf32>
    %27 = math.exp %26 : vector<8x1xf32>
    %cst_12 = arith.constant 1.000000e+00 : f32
    %28 = vector.broadcast %cst_12 : f32 to vector<8x1xf32>
    %29 = arith.subf %28, %27 : vector<8x1xf32>
    %cst_13 = arith.constant 0.000000e+00 : f32
    %30 = vector.broadcast %cst_13 : f32 to vector<8x1xf32>
    %31 = arith.maximumf %29, %30 : vector<8x1xf32>
    %32 = arith.mulf %31, %31 : vector<8x1xf32>
    %33 = arith.mulf %7, %32 : vector<8x1xf32>
    %34 = arith.mulf %33, %24 : vector<8x1xf32>
    %c0_14 = arith.constant 0 : index
    %c0_15 = arith.constant 0 : index
    %35 = memref.load %arg5[%c0_14, %c0_15] : memref<1x1xf32, #tpu.memory_space<smem>>
    %36 = vector.shape_cast %34 : vector<8x1xf32> to vector<1x8x1xf32>
    %cst_16 = arith.constant dense<0.000000e+00> : vector<1xf32>
    %37 = vector.multi_reduction <add>, %36, %cst_16 [1, 2] : vector<1x8x1xf32> to vector<1xf32>
    %38 = vector.shape_cast %37 : vector<1xf32> to vector<1x1x1xf32>
    %39 = vector.extract %38[0, 0, 0] : f32 from vector<1x1x1xf32>
    %40 = arith.addf %35, %39 : f32
    %c0_17 = arith.constant 0 : index
    %c0_18 = arith.constant 0 : index
    %41 = memref.load %arg5[%c0_17, %c0_18] : memref<1x1xf32, #tpu.memory_space<smem>>
    memref.store %40, %arg5[%c0_17, %c0_18] : memref<1x1xf32, #tpu.memory_space<smem>>
    return
  }
  func.func @transform_0(%arg0: i32, %arg1: i32) -> (i32, i32) {
    %c1_i32 = arith.constant 1 : i32
    %0 = arith.muli %arg0, %c1_i32 : i32
    %1 = arith.addi %0, %arg1 : i32
    %c0_i32 = arith.constant 0 : i32
    %2 = arith.minsi %1, %c0_i32 : i32
    %c0_i32_0 = arith.constant 0 : i32
    %c0_i32_1 = arith.constant 0 : i32
    return %2, %c0_i32_0 : i32, i32
  }
  func.func @transform_1(%arg0: i32, %arg1: i32) -> (i32, i32, i32) {
    %c1_i32 = arith.constant 1 : i32
    %0 = arith.muli %arg0, %c1_i32 : i32
    %1 = arith.addi %0, %arg1 : i32
    %c0_i32 = arith.constant 0 : i32
    %c0_i32_0 = arith.constant 0 : i32
    %c0_i32_1 = arith.constant 0 : i32
    return %1, %c0_i32, %c0_i32_0 : i32, i32, i32
  }
  func.func @transform_2(%arg0: i32, %arg1: i32) -> (i32, i32, i32) {
    %c1_i32 = arith.constant 1 : i32
    %0 = arith.muli %arg0, %c1_i32 : i32
    %1 = arith.addi %0, %arg1 : i32
    %c0_i32 = arith.constant 0 : i32
    %c0_i32_0 = arith.constant 0 : i32
    %c0_i32_1 = arith.constant 0 : i32
    return %1, %c0_i32, %c0_i32_0 : i32, i32, i32
  }
  func.func @transform_3(%arg0: i32, %arg1: i32) -> (i32, i32) {
    %c0_i32 = arith.constant 0 : i32
    %c0_i32_0 = arith.constant 0 : i32
    return %arg0, %c0_i32 : i32, i32
  }
}

</mosaic_0001>

<llo_original>
// kernel: tpu_custom_call.1
$region0: #{tpu_custom_call.1}
  #allocation0 [shape = 'u32[]', space=smem, size = 0x4, offset = 0x4, fixed_abs, tag = 'smem constant byte address 0x4 - core index']
  #allocation1 [shape = 'u32[144,128]{1,0:T(1,128)}', space=vmem, size = 0x12000, scoped, tag = 'internal scratch']
  %s0 = inlined_call_operand.hbm [shape: f32[8,128], index: 0, kind: input, shape index: {}]
  %s1 = inlined_call_operand.hbm [shape: s32[1,1,8], index: 1, kind: input, shape index: {}]
  %s2 = inlined_call_operand.hbm [shape: f32[1,1,8], index: 2, kind: input, shape index: {}]
  %s3 = inlined_call_operand.hbm [shape: f32[1,1], index: 3, kind: output, shape index: {}]
  %s4 = sld [smem:[#allocation0]]
  $region38: #{tpu_custom_call.1} parent=0
    _
  %s6 = ssub.s32 1, %s4
  %s7 = scalar_select 0, %s6, %s4
  $region1: #{tpu_custom_call.1} parent=0
    #allocation2 [shape = 'u8[4096]{0}', space=vmem, size = 0x1000, scoped, tag = 'input window, operand 0, single buffered']
    #allocation3 [shape = 's32[1]{0}', space=sflag, size = 0x4, scoped, tag = 'scoped memory for tpu_custom_call.1']
    #allocation4 [shape = 's32[1]{0}', space=sflag, size = 0x4, scoped, tag = 'scoped memory for tpu_custom_call.1']
    #allocation5 [shape = 'u8[512]{0}', space=vmem, size = 0x400, scoped, tag = 'input window, operand 1, single buffered']
    #allocation6 [shape = 's32[1]{0}', space=sflag, size = 0x4, scoped, tag = 'scoped memory for tpu_custom_call.1']
    #allocation7 [shape = 'u8[512]{0}', space=vmem, size = 0x400, scoped, tag = 'input window, operand 2, single buffered']
    #allocation8 [shape = 'u8[512]{0}', space=smem, size = 0x200, scoped, tag = 'output window, operand 0, single buffered']
    %8 = vsyncpa [#allocation3], 0
    %9 = vsyncpa [#allocation6], 0
    %10 = vsyncpa [#allocation4], 0
    // Predicated region
    $region2: #{tpu_custom_call.1} parent=1 // pred_check
      _
    $region3: #{tpu_custom_call.1} parent=1 // pred_check_branch
      %12 = sbr.rel (0) target = $region5
    $region4: #{tpu_custom_call.1} parent=1 // pred_region
      %s13 = sadd.s32 0, 0
      %p14 = scmp.lt.s32.totalorder %s13, 0
      %s15 = scalar_select %p14, %s13, 0
      %s17 = ssub.s32 128, 128
      %18 = vsyncadd [#allocation3], %s17
      %s19 = smul.addr %s15, 128
      %s20 = scalar_lea.hbm %s0, %s19
      %s22 = sshll.u32 [#allocation2], 4
      %s23 = int_to_ptr.vmem [resolvable:$true] %s22
      %25 = dma.hbm_to_vmem [thread:$0]  %s20, 128, %s23, [#allocation3]
    $region5: #{tpu_custom_call.1} parent=1 // pred_fallthru
      _
    // Predicated region
    $region6: #{tpu_custom_call.1} parent=1 // pred_check
      _
    $region7: #{tpu_custom_call.1} parent=1 // pred_check_branch
      %27 = sbr.rel (0) target = $region9
    $region8: #{tpu_custom_call.1} parent=1 // pred_region
      %s28 = sadd.s32 0, 0
      %s30 = ssub.s32 16, 16
      %31 = vsyncadd [#allocation6], %s30
      %s32 = smul.addr %s28, 16
      %s33 = scalar_lea.hbm %s1, %s32
      %s35 = sshll.u32 [#allocation5], 4
      %s36 = int_to_ptr.vmem [resolvable:$true] %s35
      %38 = dma.hbm_to_vmem [thread:$0]  %s33, 16, %s36, [#allocation6]
    $region9: #{tpu_custom_call.1} parent=1 // pred_fallthru
      _
    // Predicated region
    $region10: #{tpu_custom_call.1} parent=1 // pred_check
      _
    $region11: #{tpu_custom_call.1} parent=1 // pred_check_branch
      %40 = sbr.rel (0) target = $region13
    $region12: #{tpu_custom_call.1} parent=1 // pred_region
      %s41 = sadd.s32 0, 0
      %s43 = ssub.s32 16, 16
      %44 = vsyncadd [#allocation6], %s43
      %s45 = smul.addr %s41, 16
      %s46 = scalar_lea.hbm %s2, %s45
      %s48 = sshll.u32 [#allocation7], 4
      %s49 = int_to_ptr.vmem [resolvable:$true] %s48
      %51 = dma.hbm_to_vmem [thread:$0]  %s46, 16, %s49, [#allocation6]
    $region13: #{tpu_custom_call.1} parent=1 // pred_fallthru
      _
    // Predicated region
    $region14: #{tpu_custom_call.1} parent=1 // pred_check
      _
    $region15: #{tpu_custom_call.1} parent=1 // pred_check_branch
      %53 = sbr.rel (0) target = $region17
    $region16: #{tpu_custom_call.1} parent=1 // pred_region
      %54 = dma.done [#allocation3], 128
    $region17: #{tpu_custom_call.1} parent=1 // pred_fallthru
      _
    // Predicated region
    $region18: #{tpu_custom_call.1} parent=1 // pred_check
      _
    $region19: #{tpu_custom_call.1} parent=1 // pred_check_branch
      %56 = sbr.rel (0) target = $region21
    $region20: #{tpu_custom_call.1} parent=1 // pred_region
      %57 = dma.done [#allocation6], 16
    $region21: #{tpu_custom_call.1} parent=1 // pred_fallthru
      _
    // Predicated region
    $region22: #{tpu_custom_call.1} parent=1 // pred_check
      _
    $region23: #{tpu_custom_call.1} parent=1 // pred_check_branch
      %59 = sbr.rel (0) target = $region25
    $region24: #{tpu_custom_call.1} parent=1 // pred_region
      %60 = dma.done [#allocation6], 16
    $region25: #{tpu_custom_call.1} parent=1 // pred_fallthru
      _
    %s61 = sadd.s32 0, 0
    %p62 = scmp.lt.s32.totalorder %s61, 0
    %s63 = scalar_select %p62, %s61, 0
    %s64 = sadd.s32 0, 0
    %s65 = sadd.s32 0, 0
    %p66 = scmp.eq.s32.totalorder 0, 0
    // Predicated region
    $region26: #{tpu_custom_call.1} parent=1 // pred_check
      %p67 = pneg %p66
    $region27: #{tpu_custom_call.1} parent=1 // pred_check_branch
      %69 = sbr.rel (%p67) target = $region29
    $region28: #{tpu_custom_call.1} parent=1 // pred_region
      %s70 = scalar_lea.smem [#allocation8], 0
      %71 = sst [smem:[%s70]] 0.0
    $region29: #{tpu_custom_call.1} parent=1 // pred_fallthru
      _
    %v72 = vld [vmem:[#allocation2] sm:$0xff]
    %v73 = vld [vmem:[#allocation5] sm:$0x1]
    %v74 = vlaneseq
    %v75 = vshrl.u32 %v74, 7
    %v76 = vsub.s32 0, %v75
    %v77 = vrot.slane %v73, %v76
    %79 = vbcast.lane.b32.xlu0 %v77, 256
    %v80 = vpop.permute.xlu0 %79
    %v81 = vld [vmem:[#allocation7] sm:$0x1]
    %v82 = vlaneseq
    %v83 = vshrl.u32 %v82, 7
    %v84 = vsub.s32 0, %v83
    %v85 = vrot.slane %v81, %v84
    %87 = vbcast.lane.b32.xlu0 %v85, 256
    %v88 = vpop.permute.xlu0 %87
    %v89 = vlaneseq
    %v90 = vand.u32 %v89, 127
    %91 = vmax.xlane.f32.xlu0 %v72
    %v92 = vpop.xlane.xlu0 %91
    %v93 = vsub.f32 %v72, %v92
    %v94 = vmul.f32 %v93, 1.442695
    %v95 = vpow.pop %v94
    %96 = vadd.xlane.f32.xlu0 %v95
    %v97 = vpop.xlane.xlu0 %96
    %v98 = vlog2.pop %v97
    %v99 = vmul.f32 %v98, 0.6931472
    %v100 = vadd.f32 %v99, %v92
    %vm101 = vcmp.eq.s32.totalorder %v90, %v80
    %v102 = vsel %vm101, %v72, 0.0
    %103 = vadd.xlane.f32.xlu0 %v102
    %v104 = vpop.xlane.xlu0 %103
    %v105 = vsub.f32 %v100, %v104
    %v106 = vsub.f32 0.0, %v105
    %v107 = vmul.f32 %v106, 1.442695
    %v108 = vpow.pop %v107
    %v109 = vsub.f32 1.0, %v108
    %v110 = vmax.f32 %v109, 0.0
    %v111 = vmul.f32 %v110, %v110
    %v112 = vmul.f32 %v88, %v111
    %v113 = vmul.f32 %v112, %v105
    %s114 = sld [smem:[#allocation8]]
    %vm115 = vcmask 7168
    %v116 = vsel %vm115, %v113, 0.0
    %117 = vadd.xlane.f32.xlu0 %v116
    %v118 = vpop.xlane.xlu0 %117
    %v119 = vrot.slane %v118, 4
    %v120 = vadd.f32 %v118, %v119
    %v121 = vrot.slane %v120, 2
    %v122 = vadd.f32 %v120, %v121
    %v123 = vrot.slane %v122, 1
    %v124 = vadd.f32 %v122, %v123
    %s125 = vtos %v124
    %s126 = sadd.f32 %s114, %s125
    %s127 = scalar_lea.smem [#allocation8], 0
    %128 = sst [smem:[%s127]] %s126
    // Predicated region
    $region30: #{tpu_custom_call.1} parent=1 // pred_check
      _
    $region31: #{tpu_custom_call.1} parent=1 // pred_check_branch
      %130 = sbr.rel (0) target = $region33
    $region32: #{tpu_custom_call.1} parent=1 // pred_region
      %s132 = ssub.s32 16, 16
      %133 = vsyncadd [#allocation4], %s132
      %136 = dma.smem_to_hbm [#allocation8], 16, %s3, [#allocation4]
    $region33: #{tpu_custom_call.1} parent=1 // pred_fallthru
      _
    // Predicated region
    $region34: #{tpu_custom_call.1} parent=1 // pred_check
      _
    $region35: #{tpu_custom_call.1} parent=1 // pred_check_branch
      %138 = sbr.rel (0) target = $region37
    $region36: #{tpu_custom_call.1} parent=1 // pred_region
      %139 = dma.done [#allocation4], 16
    $region37: #{tpu_custom_call.1} parent=1 // pred_fallthru
      _
    %140 = sfence
    %141 = vsyncpa [#allocation3], 1
    %142 = vsyncpa [#allocation6], 1
    %143 = vsyncpa [#allocation4], 1

</llo_original>
